<compile_context>
chip_gen: v7x
topology: tpu7x:2x2x1
jax: 0.10.0
libtpu: 0.0.40
codegen_flags: <defaults>
</compile_context>

<pallas_src>
import functools

import jax
import jax.numpy as jnp
from jax.experimental import pallas as pl
from jax.experimental.pallas import tpu as pltpu

MIN_VALUE = -16.5
MAX_VALUE = 4.1


def conv1x1_clamp_softmax_kernel(
    wgt_ref,   # SMEM (Cout*C,)        wgt_ref[o*C + c] = w[o, c]
    b_ref,     # SMEM (Cout,)          conv bias
    x_ref,     # VMEM (C, W, H*N)      x_ref[c, w, h*N + n] = x[n, c, h, w]
    o_ref,     # VMEM (Wp, Cout*Hp*N)  o_ref[wp, o*Hp*N + hp*N + n] = out[n, o, hp, wp]
    *, batch, c_in, c_out, height, width, min_value, max_value,
):
    N, C, Cout, H, W = batch, c_in, c_out, height, width
    Hp, Wp = H + 2, W + 2
    HN = H * N        # interior lane count per output channel
    HpN = Hp * N      # lane block per output channel in the output

    min_v = jnp.float32(min_value)
    max_v = jnp.float32(max_value)

    # Padded border rows (hp == 0 or hp == Hp-1) hold only clamp(bias); their
    # softmax is the constant 1/Wp.  Initialize the whole output with it; the
    # interior lanes are overwritten below, border lanes keep this value.
    o_ref[...] = jnp.full((Wp, Cout * HpN), 1.0 / Wp, dtype=jnp.float32)

    # Channel planes, hoisted out of the per-output-channel loop.  (W, H*N)
    xs = [x_ref[c] for c in range(C)]

    for o in range(Cout):
        b_o = b_ref[o]

        # 1x1 conv == per-pixel channel contraction: VPU FMA chain with SMEM
        # scalars (K = C = 3 is far too small to feed the MXU usefully).
        y = xs[0] * wgt_ref[o * C + 0]
        for c in range(1, C):
            y = y + xs[c] * wgt_ref[o * C + c]
        y = y + b_o                                              # (W, H*N)

        # clamp_min then clamp_max
        y = jnp.minimum(jnp.maximum(y, min_v), max_v)
        b_cl = jnp.minimum(jnp.maximum(b_o, min_v), max_v)       # padded-ring value

        # Numerically stable softmax over the width axis (sublanes); the two
        # padded columns of each interior row are included analytically.
        m = jnp.maximum(jnp.max(y, axis=0, keepdims=True), b_cl)  # (1, H*N)
        e = jnp.exp(y - m)                                        # (W, H*N)
        e_pad = jnp.exp(b_cl - m)                                 # (1, H*N)
        denom = jnp.sum(e, axis=0, keepdims=True) + 2.0 * e_pad
        inv = pl.reciprocal(denom, approx=False)                  # EUP slot
        p = e * inv                                               # interior probs
        p_pad = e_pad * inv                                       # pad-column probs

        lo = o * HpN + N          # this o's interior lanes: [lo, lo + H*N)
        hi = lo + HN
        o_ref[1:W + 1, lo:hi] = p          # wp = 1 .. W
        o_ref[0:1, lo:hi] = p_pad          # wp = 0       (left pad column)
        o_ref[Wp - 1:Wp, lo:hi] = p_pad    # wp = Wp - 1  (right pad column)


def model_forward(x, w, b, min_value=MIN_VALUE, max_value=MAX_VALUE):
    """x: (N, C, H, W) float32; w: (Cout, C) 1x1-conv weight; b: (Cout,)."""
    N, C, H, W = x.shape
    Cout = w.shape[0]
    Hp, Wp = H + 2, W + 2

    # (N, C, H, W) -> (C, W, H*N): softmax axis (width) on sublanes,
    # (h, n) collapsed onto lanes.  ~6 KB transpose, noise.
    x_t = jnp.transpose(x, (1, 3, 2, 0)).reshape(C, W, H * N)
    w_flat = w.reshape(Cout * C).astype(jnp.float32)
    b_flat = b.astype(jnp.float32)

    kern = functools.partial(
        conv1x1_clamp_softmax_kernel,
        batch=N, c_in=C, c_out=Cout, height=H, width=W,
        min_value=float(min_value), max_value=float(max_value),
    )
    out_t = pl.pallas_call(
        kern,
        out_shape=jax.ShapeDtypeStruct((Wp, Cout * Hp * N), jnp.float32),
        in_specs=[
            pl.BlockSpec(memory_space=pltpu.MemorySpace.SMEM),   # weights (scalars)
            pl.BlockSpec(memory_space=pltpu.MemorySpace.SMEM),   # bias    (scalars)
            pl.BlockSpec(memory_space=pltpu.MemorySpace.VMEM),   # x_t
        ],
        out_specs=pl.BlockSpec(memory_space=pltpu.MemorySpace.VMEM),
    )(w_flat, b_flat, x_t)

    # (Wp, Cout*Hp*N) -> (Wp, Cout, Hp, N) -> (N, Cout, Hp, Wp).  ~21 KB, noise.
    return jnp.transpose(out_t.reshape(Wp, Cout, Hp, N), (3, 1, 2, 0))


def reference_forward(x, w, b, min_value=MIN_VALUE, max_value=MAX_VALUE):
    xp = jnp.pad(x, ((0, 0), (0, 0), (1, 1), (1, 1)))
    y = jnp.einsum("oc,nchw->nohw", w, xp,
                   precision=jax.lax.Precision.HIGHEST) + b[None, :, None, None]
    y = jnp.clip(y, min_value, max_value)
    return jax.nn.softmax(y, axis=-1)


if __name__ == "__main__":
    key = jax.random.PRNGKey(0)
    kx, kw, kb = jax.random.split(key, 3)

    N, Cin, H, W = 2, 3, 16, 16
    Cout = 8

    # Input mimics torch.randint(256, ...) but as float32 (conv needs float).
    x = jax.random.randint(kx, (N, Cin, H, W), 0, 256).astype(jnp.float32)

    # PyTorch-style uniform(-1/sqrt(fan_in), 1/sqrt(fan_in)) init.
    fan_in = Cin
    bound = 1.0 / (fan_in ** 0.5)
    w = jax.random.uniform(kw, (Cout, Cin), jnp.float32, -bound, bound)
    b = jax.random.uniform(kb, (Cout,), jnp.float32, -bound, bound)

    fwd = jax.jit(model_forward)
    out = jax.block_until_ready(fwd(x, w, b))

    ref = reference_forward(x, w, b)
    assert out.shape == (N, Cout, H + 2, W + 2)
    # 1e-4 covers f32 accumulation-order differences between the in-kernel
    # VPU FMA chain and the XLA einsum reference (reciprocal is exact).
    assert jnp.allclose(out, ref, atol=1e-4, rtol=1e-4), float(
        jnp.max(jnp.abs(out - ref)))

    print("KERNEL_OK")
</pallas_src>

<mosaic_0001>
module attributes {stable_mosaic.version = 11 : i64} {
  func.func @conv1x1_clamp_softmax_kernel(%arg0: memref<24xf32, #tpu.memory_space<smem>>, %arg1: memref<8xf32, #tpu.memory_space<smem>>, %arg2: memref<3x16x32xf32, #tpu.memory_space<vmem>>, %arg3: memref<18x288xf32, #tpu.memory_space<vmem>>) attributes {dimension_semantics = [], scalar_prefetch = 0 : i64, scratch_operands = 0 : i64, tpu.core_type = #tpu.core_type<tc>} {
    %cst = arith.constant 0.055555556 : f32
    %0 = vector.broadcast %cst : f32 to vector<18x288xf32>
    %c0 = arith.constant 0 : index
    %c0_0 = arith.constant 0 : index
    %1 = vector.load %arg3[%c0, %c0_0] : memref<18x288xf32, #tpu.memory_space<vmem>>, vector<18x288xf32>
    tpu.vector_store %arg3[%c0, %c0_0], %0 {strides = array<i32>} : memref<18x288xf32, #tpu.memory_space<vmem>>, vector<18x288xf32>,
    %c0_1 = arith.constant 0 : index
    %c0_2 = arith.constant 0 : index
    %c0_3 = arith.constant 0 : index
    %2 = vector.load %arg2[%c0_1, %c0_2, %c0_3] : memref<3x16x32xf32, #tpu.memory_space<vmem>>, vector<1x16x32xf32>
    %3 = vector.shape_cast %2 : vector<1x16x32xf32> to vector<16x32xf32>
    %c1 = arith.constant 1 : index
    %c0_4 = arith.constant 0 : index
    %c0_5 = arith.constant 0 : index
    %4 = vector.load %arg2[%c1, %c0_4, %c0_5] : memref<3x16x32xf32, #tpu.memory_space<vmem>>, vector<1x16x32xf32>
    %5 = vector.shape_cast %4 : vector<1x16x32xf32> to vector<16x32xf32>
    %c2 = arith.constant 2 : index
    %c0_6 = arith.constant 0 : index
    %c0_7 = arith.constant 0 : index
    %6 = vector.load %arg2[%c2, %c0_6, %c0_7] : memref<3x16x32xf32, #tpu.memory_space<vmem>>, vector<1x16x32xf32>
    %7 = vector.shape_cast %6 : vector<1x16x32xf32> to vector<16x32xf32>
    %c0_8 = arith.constant 0 : index
    %8 = memref.load %arg1[%c0_8] : memref<8xf32, #tpu.memory_space<smem>>
    %c0_9 = arith.constant 0 : index
    %9 = memref.load %arg0[%c0_9] : memref<24xf32, #tpu.memory_space<smem>>
    %10 = vector.broadcast %9 : f32 to vector<16x32xf32>
    %11 = arith.mulf %3, %10 : vector<16x32xf32>
    %c1_10 = arith.constant 1 : index
    %12 = memref.load %arg0[%c1_10] : memref<24xf32, #tpu.memory_space<smem>>
    %13 = vector.broadcast %12 : f32 to vector<16x32xf32>
    %14 = arith.mulf %5, %13 : vector<16x32xf32>
    %15 = arith.addf %11, %14 : vector<16x32xf32>
    %c2_11 = arith.constant 2 : index
    %16 = memref.load %arg0[%c2_11] : memref<24xf32, #tpu.memory_space<smem>>
    %17 = vector.broadcast %16 : f32 to vector<16x32xf32>
    %18 = arith.mulf %7, %17 : vector<16x32xf32>
    %19 = arith.addf %15, %18 : vector<16x32xf32>
    %20 = vector.broadcast %8 : f32 to vector<16x32xf32>
    %21 = arith.addf %19, %20 : vector<16x32xf32>
    %cst_12 = arith.constant -1.650000e+01 : f32
    %22 = vector.broadcast %cst_12 : f32 to vector<16x32xf32>
    %23 = arith.maximumf %21, %22 : vector<16x32xf32>
    %cst_13 = arith.constant 4.100000e+00 : f32
    %24 = vector.broadcast %cst_13 : f32 to vector<16x32xf32>
    %25 = arith.minimumf %23, %24 : vector<16x32xf32>
    %cst_14 = arith.constant -1.650000e+01 : f32
    %26 = arith.maximumf %8, %cst_14 : f32
    %cst_15 = arith.constant 4.100000e+00 : f32
    %27 = arith.minimumf %26, %cst_15 : f32
    %cst_16 = arith.constant dense<0xFF800000> : vector<32xf32>
    %28 = vector.multi_reduction <maximumf>, %25, %cst_16 [0] : vector<16x32xf32> to vector<32xf32>
    %29 = vector.shape_cast %28 : vector<32xf32> to vector<1x32xf32>
    %30 = vector.broadcast %27 : f32 to vector<1x32xf32>
    %31 = arith.maximumf %29, %30 : vector<1x32xf32>
    %32 = vector.broadcast %31 : vector<1x32xf32> to vector<16x32xf32>
    %33 = arith.subf %25, %32 : vector<16x32xf32>
    %34 = math.exp %33 : vector<16x32xf32>
    %35 = vector.broadcast %27 : f32 to vector<1x32xf32>
    %36 = arith.subf %35, %31 : vector<1x32xf32>
    %37 = math.exp %36 : vector<1x32xf32>
    %cst_17 = arith.constant dense<0.000000e+00> : vector<32xf32>
    %38 = vector.multi_reduction <add>, %34, %cst_17 [0] : vector<16x32xf32> to vector<32xf32>
    %39 = vector.shape_cast %38 : vector<32xf32> to vector<1x32xf32>
    %cst_18 = arith.constant 2.000000e+00 : f32
    %40 = vector.broadcast %cst_18 : f32 to vector<1x32xf32>
    %41 = arith.mulf %40, %37 : vector<1x32xf32>
    %42 = arith.addf %39, %41 : vector<1x32xf32>
    %43 = tpu.reciprocal %42 : vector<1x32xf32> -> vector<1x32xf32>
    %44 = vector.broadcast %43 : vector<1x32xf32> to vector<16x32xf32>
    %45 = arith.mulf %34, %44 : vector<16x32xf32>
    %46 = arith.mulf %37, %43 : vector<1x32xf32>
    %c1_19 = arith.constant 1 : index
    %c2_20 = arith.constant 2 : index
    %47 = vector.load %arg3[%c1_19, %c2_20] : memref<18x288xf32, #tpu.memory_space<vmem>>, vector<16x32xf32>
    tpu.vector_store %arg3[%c1_19, %c2_20], %45 {strides = array<i32>} : memref<18x288xf32, #tpu.memory_space<vmem>>, vector<16x32xf32>,
    %c0_21 = arith.constant 0 : index
    %c2_22 = arith.constant 2 : index
    %48 = vector.load %arg3[%c0_21, %c2_22] : memref<18x288xf32, #tpu.memory_space<vmem>>, vector<1x32xf32>
    tpu.vector_store %arg3[%c0_21, %c2_22], %46 {strides = array<i32>} : memref<18x288xf32, #tpu.memory_space<vmem>>, vector<1x32xf32>,
    %c17 = arith.constant 17 : index
    %c2_23 = arith.constant 2 : index
    %49 = vector.load %arg3[%c17, %c2_23] : memref<18x288xf32, #tpu.memory_space<vmem>>, vector<1x32xf32>
    tpu.vector_store %arg3[%c17, %c2_23], %46 {strides = array<i32>} : memref<18x288xf32, #tpu.memory_space<vmem>>, vector<1x32xf32>,
    %c1_24 = arith.constant 1 : index
    %50 = memref.load %arg1[%c1_24] : memref<8xf32, #tpu.memory_space<smem>>
    %c3 = arith.constant 3 : index
    %51 = memref.load %arg0[%c3] : memref<24xf32, #tpu.memory_space<smem>>
    %52 = vector.broadcast %51 : f32 to vector<16x32xf32>
    %53 = arith.mulf %3, %52 : vector<16x32xf32>
    %c4 = arith.constant 4 : index
    %54 = memref.load %arg0[%c4] : memref<24xf32, #tpu.memory_space<smem>>
    %55 = vector.broadcast %54 : f32 to vector<16x32xf32>
    %56 = arith.mulf %5, %55 : vector<16x32xf32>
    %57 = arith.addf %53, %56 : vector<16x32xf32>
    %c5 = arith.constant 5 : index
    %58 = memref.load %arg0[%c5] : memref<24xf32, #tpu.memory_space<smem>>
    %59 = vector.broadcast %58 : f32 to vector<16x32xf32>
    %60 = arith.mulf %7, %59 : vector<16x32xf32>
    %61 = arith.addf %57, %60 : vector<16x32xf32>
    %62 = vector.broadcast %50 : f32 to vector<16x32xf32>
    %63 = arith.addf %61, %62 : vector<16x32xf32>
    %cst_25 = arith.constant -1.650000e+01 : f32
    %64 = vector.broadcast %cst_25 : f32 to vector<16x32xf32>
    %65 = arith.maximumf %63, %64 : vector<16x32xf32>
    %cst_26 = arith.constant 4.100000e+00 : f32
    %66 = vector.broadcast %cst_26 : f32 to vector<16x32xf32>
    %67 = arith.minimumf %65, %66 : vector<16x32xf32>
    %cst_27 = arith.constant -1.650000e+01 : f32
    %68 = arith.maximumf %50, %cst_27 : f32
    %cst_28 = arith.constant 4.100000e+00 : f32
    %69 = arith.minimumf %68, %cst_28 : f32
    %cst_29 = arith.constant dense<0xFF800000> : vector<32xf32>
    %70 = vector.multi_reduction <maximumf>, %67, %cst_29 [0] : vector<16x32xf32> to vector<32xf32>
    %71 = vector.shape_cast %70 : vector<32xf32> to vector<1x32xf32>
    %72 = vector.broadcast %69 : f32 to vector<1x32xf32>
    %73 = arith.maximumf %71, %72 : vector<1x32xf32>
    %74 = vector.broadcast %73 : vector<1x32xf32> to vector<16x32xf32>
    %75 = arith.subf %67, %74 : vector<16x32xf32>
    %76 = math.exp %75 : vector<16x32xf32>
    %77 = vector.broadcast %69 : f32 to vector<1x32xf32>
    %78 = arith.subf %77, %73 : vector<1x32xf32>
    %79 = math.exp %78 : vector<1x32xf32>
    %cst_30 = arith.constant dense<0.000000e+00> : vector<32xf32>
    %80 = vector.multi_reduction <add>, %76, %cst_30 [0] : vector<16x32xf32> to vector<32xf32>
    %81 = vector.shape_cast %80 : vector<32xf32> to vector<1x32xf32>
    %cst_31 = arith.constant 2.000000e+00 : f32
    %82 = vector.broadcast %cst_31 : f32 to vector<1x32xf32>
    %83 = arith.mulf %82, %79 : vector<1x32xf32>
    %84 = arith.addf %81, %83 : vector<1x32xf32>
    %85 = tpu.reciprocal %84 : vector<1x32xf32> -> vector<1x32xf32>
    %86 = vector.broadcast %85 : vector<1x32xf32> to vector<16x32xf32>
    %87 = arith.mulf %76, %86 : vector<16x32xf32>
    %88 = arith.mulf %79, %85 : vector<1x32xf32>
    %c1_32 = arith.constant 1 : index
    %c38 = arith.constant 38 : index
    %89 = vector.load %arg3[%c1_32, %c38] : memref<18x288xf32, #tpu.memory_space<vmem>>, vector<16x32xf32>
    tpu.vector_store %arg3[%c1_32, %c38], %87 {strides = array<i32>} : memref<18x288xf32, #tpu.memory_space<vmem>>, vector<16x32xf32>,
    %c0_33 = arith.constant 0 : index
    %c38_34 = arith.constant 38 : index
    %90 = vector.load %arg3[%c0_33, %c38_34] : memref<18x288xf32, #tpu.memory_space<vmem>>, vector<1x32xf32>
    tpu.vector_store %arg3[%c0_33, %c38_34], %88 {strides = array<i32>} : memref<18x288xf32, #tpu.memory_space<vmem>>, vector<1x32xf32>,
    %c17_35 = arith.constant 17 : index
    %c38_36 = arith.constant 38 : index
    %91 = vector.load %arg3[%c17_35, %c38_36] : memref<18x288xf32, #tpu.memory_space<vmem>>, vector<1x32xf32>
    tpu.vector_store %arg3[%c17_35, %c38_36], %88 {strides = array<i32>} : memref<18x288xf32, #tpu.memory_space<vmem>>, vector<1x32xf32>,
    %c2_37 = arith.constant 2 : index
    %92 = memref.load %arg1[%c2_37] : memref<8xf32, #tpu.memory_space<smem>>
    %c6 = arith.constant 6 : index
    %93 = memref.load %arg0[%c6] : memref<24xf32, #tpu.memory_space<smem>>
    %94 = vector.broadcast %93 : f32 to vector<16x32xf32>
    %95 = arith.mulf %3, %94 : vector<16x32xf32>
    %c7 = arith.constant 7 : index
    %96 = memref.load %arg0[%c7] : memref<24xf32, #tpu.memory_space<smem>>
    %97 = vector.broadcast %96 : f32 to vector<16x32xf32>
    %98 = arith.mulf %5, %97 : vector<16x32xf32>
    %99 = arith.addf %95, %98 : vector<16x32xf32>
    %c8 = arith.constant 8 : index
    %100 = memref.load %arg0[%c8] : memref<24xf32, #tpu.memory_space<smem>>
    %101 = vector.broadcast %100 : f32 to vector<16x32xf32>
    %102 = arith.mulf %7, %101 : vector<16x32xf32>
    %103 = arith.addf %99, %102 : vector<16x32xf32>
    %104 = vector.broadcast %92 : f32 to vector<16x32xf32>
    %105 = arith.addf %103, %104 : vector<16x32xf32>
    %cst_38 = arith.constant -1.650000e+01 : f32
    %106 = vector.broadcast %cst_38 : f32 to vector<16x32xf32>
    %107 = arith.maximumf %105, %106 : vector<16x32xf32>
    %cst_39 = arith.constant 4.100000e+00 : f32
    %108 = vector.broadcast %cst_39 : f32 to vector<16x32xf32>
    %109 = arith.minimumf %107, %108 : vector<16x32xf32>
    %cst_40 = arith.constant -1.650000e+01 : f32
    %110 = arith.maximumf %92, %cst_40 : f32
    %cst_41 = arith.constant 4.100000e+00 : f32
    %111 = arith.minimumf %110, %cst_41 : f32
    %cst_42 = arith.constant dense<0xFF800000> : vector<32xf32>
    %112 = vector.multi_reduction <maximumf>, %109, %cst_42 [0] : vector<16x32xf32> to vector<32xf32>
    %113 = vector.shape_cast %112 : vector<32xf32> to vector<1x32xf32>
    %114 = vector.broadcast %111 : f32 to vector<1x32xf32>
    %115 = arith.maximumf %113, %114 : vector<1x32xf32>
    %116 = vector.broadcast %115 : vector<1x32xf32> to vector<16x32xf32>
    %117 = arith.subf %109, %116 : vector<16x32xf32>
    %118 = math.exp %117 : vector<16x32xf32>
    %119 = vector.broadcast %111 : f32 to vector<1x32xf32>
    %120 = arith.subf %119, %115 : vector<1x32xf32>
    %121 = math.exp %120 : vector<1x32xf32>
    %cst_43 = arith.constant dense<0.000000e+00> : vector<32xf32>
    %122 = vector.multi_reduction <add>, %118, %cst_43 [0] : vector<16x32xf32> to vector<32xf32>
    %123 = vector.shape_cast %122 : vector<32xf32> to vector<1x32xf32>
    %cst_44 = arith.constant 2.000000e+00 : f32
    %124 = vector.broadcast %cst_44 : f32 to vector<1x32xf32>
    %125 = arith.mulf %124, %121 : vector<1x32xf32>
    %126 = arith.addf %123, %125 : vector<1x32xf32>
    %127 = tpu.reciprocal %126 : vector<1x32xf32> -> vector<1x32xf32>
    %128 = vector.broadcast %127 : vector<1x32xf32> to vector<16x32xf32>
    %129 = arith.mulf %118, %128 : vector<16x32xf32>
    %130 = arith.mulf %121, %127 : vector<1x32xf32>
    %c1_45 = arith.constant 1 : index
    %c74 = arith.constant 74 : index
    %131 = vector.load %arg3[%c1_45, %c74] : memref<18x288xf32, #tpu.memory_space<vmem>>, vector<16x32xf32>
    tpu.vector_store %arg3[%c1_45, %c74], %129 {strides = array<i32>} : memref<18x288xf32, #tpu.memory_space<vmem>>, vector<16x32xf32>,
    %c0_46 = arith.constant 0 : index
    %c74_47 = arith.constant 74 : index
    %132 = vector.load %arg3[%c0_46, %c74_47] : memref<18x288xf32, #tpu.memory_space<vmem>>, vector<1x32xf32>
    tpu.vector_store %arg3[%c0_46, %c74_47], %130 {strides = array<i32>} : memref<18x288xf32, #tpu.memory_space<vmem>>, vector<1x32xf32>,
    %c17_48 = arith.constant 17 : index
    %c74_49 = arith.constant 74 : index
    %133 = vector.load %arg3[%c17_48, %c74_49] : memref<18x288xf32, #tpu.memory_space<vmem>>, vector<1x32xf32>
    tpu.vector_store %arg3[%c17_48, %c74_49], %130 {strides = array<i32>} : memref<18x288xf32, #tpu.memory_space<vmem>>, vector<1x32xf32>,
    %c3_50 = arith.constant 3 : index
    %134 = memref.load %arg1[%c3_50] : memref<8xf32, #tpu.memory_space<smem>>
    %c9 = arith.constant 9 : index
    %135 = memref.load %arg0[%c9] : memref<24xf32, #tpu.memory_space<smem>>
    %136 = vector.broadcast %135 : f32 to vector<16x32xf32>
    %137 = arith.mulf %3, %136 : vector<16x32xf32>
    %c10 = arith.constant 10 : index
    %138 = memref.load %arg0[%c10] : memref<24xf32, #tpu.memory_space<smem>>
    %139 = vector.broadcast %138 : f32 to vector<16x32xf32>
    %140 = arith.mulf %5, %139 : vector<16x32xf32>
    %141 = arith.addf %137, %140 : vector<16x32xf32>
    %c11 = arith.constant 11 : index
    %142 = memref.load %arg0[%c11] : memref<24xf32, #tpu.memory_space<smem>>
    %143 = vector.broadcast %142 : f32 to vector<16x32xf32>
    %144 = arith.mulf %7, %143 : vector<16x32xf32>
    %145 = arith.addf %141, %144 : vector<16x32xf32>
    %146 = vector.broadcast %134 : f32 to vector<16x32xf32>
    %147 = arith.addf %145, %146 : vector<16x32xf32>
    %cst_51 = arith.constant -1.650000e+01 : f32
    %148 = vector.broadcast %cst_51 : f32 to vector<16x32xf32>
    %149 = arith.maximumf %147, %148 : vector<16x32xf32>
    %cst_52 = arith.constant 4.100000e+00 : f32
    %150 = vector.broadcast %cst_52 : f32 to vector<16x32xf32>
    %151 = arith.minimumf %149, %150 : vector<16x32xf32>
    %cst_53 = arith.constant -1.650000e+01 : f32
    %152 = arith.maximumf %134, %cst_53 : f32
    %cst_54 = arith.constant 4.100000e+00 : f32
    %153 = arith.minimumf %152, %cst_54 : f32
    %cst_55 = arith.constant dense<0xFF800000> : vector<32xf32>
    %154 = vector.multi_reduction <maximumf>, %151, %cst_55 [0] : vector<16x32xf32> to vector<32xf32>
    %155 = vector.shape_cast %154 : vector<32xf32> to vector<1x32xf32>
    %156 = vector.broadcast %153 : f32 to vector<1x32xf32>
    %157 = arith.maximumf %155, %156 : vector<1x32xf32>
    %158 = vector.broadcast %157 : vector<1x32xf32> to vector<16x32xf32>
    %159 = arith.subf %151, %158 : vector<16x32xf32>
    %160 = math.exp %159 : vector<16x32xf32>
    %161 = vector.broadcast %153 : f32 to vector<1x32xf32>
    %162 = arith.subf %161, %157 : vector<1x32xf32>
    %163 = math.exp %162 : vector<1x32xf32>
    %cst_56 = arith.constant dense<0.000000e+00> : vector<32xf32>
    %164 = vector.multi_reduction <add>, %160, %cst_56 [0] : vector<16x32xf32> to vector<32xf32>
    %165 = vector.shape_cast %164 : vector<32xf32> to vector<1x32xf32>
    %cst_57 = arith.constant 2.000000e+00 : f32
    %166 = vector.broadcast %cst_57 : f32 to vector<1x32xf32>
    %167 = arith.mulf %166, %163 : vector<1x32xf32>
    %168 = arith.addf %165, %167 : vector<1x32xf32>
    %169 = tpu.reciprocal %168 : vector<1x32xf32> -> vector<1x32xf32>
    %170 = vector.broadcast %169 : vector<1x32xf32> to vector<16x32xf32>
    %171 = arith.mulf %160, %170 : vector<16x32xf32>
    %172 = arith.mulf %163, %169 : vector<1x32xf32>
    %c1_58 = arith.constant 1 : index
    %c110 = arith.constant 110 : index
    %173 = vector.load %arg3[%c1_58, %c110] : memref<18x288xf32, #tpu.memory_space<vmem>>, vector<16x32xf32>
    tpu.vector_store %arg3[%c1_58, %c110], %171 {strides = array<i32>} : memref<18x288xf32, #tpu.memory_space<vmem>>, vector<16x32xf32>,
    %c0_59 = arith.constant 0 : index
    %c110_60 = arith.constant 110 : index
    %174 = vector.load %arg3[%c0_59, %c110_60] : memref<18x288xf32, #tpu.memory_space<vmem>>, vector<1x32xf32>
    tpu.vector_store %arg3[%c0_59, %c110_60], %172 {strides = array<i32>} : memref<18x288xf32, #tpu.memory_space<vmem>>, vector<1x32xf32>,
    %c17_61 = arith.constant 17 : index
    %c110_62 = arith.constant 110 : index
    %175 = vector.load %arg3[%c17_61, %c110_62] : memref<18x288xf32, #tpu.memory_space<vmem>>, vector<1x32xf32>
    tpu.vector_store %arg3[%c17_61, %c110_62], %172 {strides = array<i32>} : memref<18x288xf32, #tpu.memory_space<vmem>>, vector<1x32xf32>,
    %c4_63 = arith.constant 4 : index
    %176 = memref.load %arg1[%c4_63] : memref<8xf32, #tpu.memory_space<smem>>
    %c12 = arith.constant 12 : index
    %177 = memref.load %arg0[%c12] : memref<24xf32, #tpu.memory_space<smem>>
    %178 = vector.broadcast %177 : f32 to vector<16x32xf32>
    %179 = arith.mulf %3, %178 : vector<16x32xf32>
    %c13 = arith.constant 13 : index
    %180 = memref.load %arg0[%c13] : memref<24xf32, #tpu.memory_space<smem>>
    %181 = vector.broadcast %180 : f32 to vector<16x32xf32>
    %182 = arith.mulf %5, %181 : vector<16x32xf32>
    %183 = arith.addf %179, %182 : vector<16x32xf32>
    %c14 = arith.constant 14 : index
    %184 = memref.load %arg0[%c14] : memref<24xf32, #tpu.memory_space<smem>>
    %185 = vector.broadcast %184 : f32 to vector<16x32xf32>
    %186 = arith.mulf %7, %185 : vector<16x32xf32>
    %187 = arith.addf %183, %186 : vector<16x32xf32>
    %188 = vector.broadcast %176 : f32 to vector<16x32xf32>
    %189 = arith.addf %187, %188 : vector<16x32xf32>
    %cst_64 = arith.constant -1.650000e+01 : f32
    %190 = vector.broadcast %cst_64 : f32 to vector<16x32xf32>
    %191 = arith.maximumf %189, %190 : vector<16x32xf32>
    %cst_65 = arith.constant 4.100000e+00 : f32
    %192 = vector.broadcast %cst_65 : f32 to vector<16x32xf32>
    %193 = arith.minimumf %191, %192 : vector<16x32xf32>
    %cst_66 = arith.constant -1.650000e+01 : f32
    %194 = arith.maximumf %176, %cst_66 : f32
    %cst_67 = arith.constant 4.100000e+00 : f32
    %195 = arith.minimumf %194, %cst_67 : f32
    %cst_68 = arith.constant dense<0xFF800000> : vector<32xf32>
    %196 = vector.multi_reduction <maximumf>, %193, %cst_68 [0] : vector<16x32xf32> to vector<32xf32>
    %197 = vector.shape_cast %196 : vector<32xf32> to vector<1x32xf32>
    %198 = vector.broadcast %195 : f32 to vector<1x32xf32>
    %199 = arith.maximumf %197, %198 : vector<1x32xf32>
    %200 = vector.broadcast %199 : vector<1x32xf32> to vector<16x32xf32>
    %201 = arith.subf %193, %200 : vector<16x32xf32>
    %202 = math.exp %201 : vector<16x32xf32>
    %203 = vector.broadcast %195 : f32 to vector<1x32xf32>
    %204 = arith.subf %203, %199 : vector<1x32xf32>
    %205 = math.exp %204 : vector<1x32xf32>
    %cst_69 = arith.constant dense<0.000000e+00> : vector<32xf32>
    %206 = vector.multi_reduction <add>, %202, %cst_69 [0] : vector<16x32xf32> to vector<32xf32>
    %207 = vector.shape_cast %206 : vector<32xf32> to vector<1x32xf32>
    %cst_70 = arith.constant 2.000000e+00 : f32
    %208 = vector.broadcast %cst_70 : f32 to vector<1x32xf32>
    %209 = arith.mulf %208, %205 : vector<1x32xf32>
    %210 = arith.addf %207, %209 : vector<1x32xf32>
    %211 = tpu.reciprocal %210 : vector<1x32xf32> -> vector<1x32xf32>
    %212 = vector.broadcast %211 : vector<1x32xf32> to vector<16x32xf32>
    %213 = arith.mulf %202, %212 : vector<16x32xf32>
    %214 = arith.mulf %205, %211 : vector<1x32xf32>
    %c1_71 = arith.constant 1 : index
    %c146 = arith.constant 146 : index
    %215 = vector.load %arg3[%c1_71, %c146] : memref<18x288xf32, #tpu.memory_space<vmem>>, vector<16x32xf32>
    tpu.vector_store %arg3[%c1_71, %c146], %213 {strides = array<i32>} : memref<18x288xf32, #tpu.memory_space<vmem>>, vector<16x32xf32>,
    %c0_72 = arith.constant 0 : index
    %c146_73 = arith.constant 146 : index
    %216 = vector.load %arg3[%c0_72, %c146_73] : memref<18x288xf32, #tpu.memory_space<vmem>>, vector<1x32xf32>
    tpu.vector_store %arg3[%c0_72, %c146_73], %214 {strides = array<i32>} : memref<18x288xf32, #tpu.memory_space<vmem>>, vector<1x32xf32>,
    %c17_74 = arith.constant 17 : index
    %c146_75 = arith.constant 146 : index
    %217 = vector.load %arg3[%c17_74, %c146_75] : memref<18x288xf32, #tpu.memory_space<vmem>>, vector<1x32xf32>
    tpu.vector_store %arg3[%c17_74, %c146_75], %214 {strides = array<i32>} : memref<18x288xf32, #tpu.memory_space<vmem>>, vector<1x32xf32>,
    %c5_76 = arith.constant 5 : index
    %218 = memref.load %arg1[%c5_76] : memref<8xf32, #tpu.memory_space<smem>>
    %c15 = arith.constant 15 : index
    %219 = memref.load %arg0[%c15] : memref<24xf32, #tpu.memory_space<smem>>
    %220 = vector.broadcast %219 : f32 to vector<16x32xf32>
    %221 = arith.mulf %3, %220 : vector<16x32xf32>
    %c16 = arith.constant 16 : index
    %222 = memref.load %arg0[%c16] : memref<24xf32, #tpu.memory_space<smem>>
    %223 = vector.broadcast %222 : f32 to vector<16x32xf32>
    %224 = arith.mulf %5, %223 : vector<16x32xf32>
    %225 = arith.addf %221, %224 : vector<16x32xf32>
    %c17_77 = arith.constant 17 : index
    %226 = memref.load %arg0[%c17_77] : memref<24xf32, #tpu.memory_space<smem>>
    %227 = vector.broadcast %226 : f32 to vector<16x32xf32>
    %228 = arith.mulf %7, %227 : vector<16x32xf32>
    %229 = arith.addf %225, %228 : vector<16x32xf32>
    %230 = vector.broadcast %218 : f32 to vector<16x32xf32>
    %231 = arith.addf %229, %230 : vector<16x32xf32>
    %cst_78 = arith.constant -1.650000e+01 : f32
    %232 = vector.broadcast %cst_78 : f32 to vector<16x32xf32>
    %233 = arith.maximumf %231, %232 : vector<16x32xf32>
    %cst_79 = arith.constant 4.100000e+00 : f32
    %234 = vector.broadcast %cst_79 : f32 to vector<16x32xf32>
    %235 = arith.minimumf %233, %234 : vector<16x32xf32>
    %cst_80 = arith.constant -1.650000e+01 : f32
    %236 = arith.maximumf %218, %cst_80 : f32
    %cst_81 = arith.constant 4.100000e+00 : f32
    %237 = arith.minimumf %236, %cst_81 : f32
    %cst_82 = arith.constant dense<0xFF800000> : vector<32xf32>
    %238 = vector.multi_reduction <maximumf>, %235, %cst_82 [0] : vector<16x32xf32> to vector<32xf32>
    %239 = vector.shape_cast %238 : vector<32xf32> to vector<1x32xf32>
    %240 = vector.broadcast %237 : f32 to vector<1x32xf32>
    %241 = arith.maximumf %239, %240 : vector<1x32xf32>
    %242 = vector.broadcast %241 : vector<1x32xf32> to vector<16x32xf32>
    %243 = arith.subf %235, %242 : vector<16x32xf32>
    %244 = math.exp %243 : vector<16x32xf32>
    %245 = vector.broadcast %237 : f32 to vector<1x32xf32>
    %246 = arith.subf %245, %241 : vector<1x32xf32>
    %247 = math.exp %246 : vector<1x32xf32>
    %cst_83 = arith.constant dense<0.000000e+00> : vector<32xf32>
    %248 = vector.multi_reduction <add>, %244, %cst_83 [0] : vector<16x32xf32> to vector<32xf32>
    %249 = vector.shape_cast %248 : vector<32xf32> to vector<1x32xf32>
    %cst_84 = arith.constant 2.000000e+00 : f32
    %250 = vector.broadcast %cst_84 : f32 to vector<1x32xf32>
    %251 = arith.mulf %250, %247 : vector<1x32xf32>
    %252 = arith.addf %249, %251 : vector<1x32xf32>
    %253 = tpu.reciprocal %252 : vector<1x32xf32> -> vector<1x32xf32>
    %254 = vector.broadcast %253 : vector<1x32xf32> to vector<16x32xf32>
    %255 = arith.mulf %244, %254 : vector<16x32xf32>
    %256 = arith.mulf %247, %253 : vector<1x32xf32>
    %c1_85 = arith.constant 1 : index
    %c182 = arith.constant 182 : index
    %257 = vector.load %arg3[%c1_85, %c182] : memref<18x288xf32, #tpu.memory_space<vmem>>, vector<16x32xf32>
    tpu.vector_store %arg3[%c1_85, %c182], %255 {strides = array<i32>} : memref<18x288xf32, #tpu.memory_space<vmem>>, vector<16x32xf32>,
    %c0_86 = arith.constant 0 : index
    %c182_87 = arith.constant 182 : index
    %258 = vector.load %arg3[%c0_86, %c182_87] : memref<18x288xf32, #tpu.memory_space<vmem>>, vector<1x32xf32>
    tpu.vector_store %arg3[%c0_86, %c182_87], %256 {strides = array<i32>} : memref<18x288xf32, #tpu.memory_space<vmem>>, vector<1x32xf32>,
    %c17_88 = arith.constant 17 : index
    %c182_89 = arith.constant 182 : index
    %259 = vector.load %arg3[%c17_88, %c182_89] : memref<18x288xf32, #tpu.memory_space<vmem>>, vector<1x32xf32>
    tpu.vector_store %arg3[%c17_88, %c182_89], %256 {strides = array<i32>} : memref<18x288xf32, #tpu.memory_space<vmem>>, vector<1x32xf32>,
    %c6_90 = arith.constant 6 : index
    %260 = memref.load %arg1[%c6_90] : memref<8xf32, #tpu.memory_space<smem>>
    %c18 = arith.constant 18 : index
    %261 = memref.load %arg0[%c18] : memref<24xf32, #tpu.memory_space<smem>>
    %262 = vector.broadcast %261 : f32 to vector<16x32xf32>
    %263 = arith.mulf %3, %262 : vector<16x32xf32>
    %c19 = arith.constant 19 : index
    %264 = memref.load %arg0[%c19] : memref<24xf32, #tpu.memory_space<smem>>
    %265 = vector.broadcast %264 : f32 to vector<16x32xf32>
    %266 = arith.mulf %5, %265 : vector<16x32xf32>
    %267 = arith.addf %263, %266 : vector<16x32xf32>
    %c20 = arith.constant 20 : index
    %268 = memref.load %arg0[%c20] : memref<24xf32, #tpu.memory_space<smem>>
    %269 = vector.broadcast %268 : f32 to vector<16x32xf32>
    %270 = arith.mulf %7, %269 : vector<16x32xf32>
    %271 = arith.addf %267, %270 : vector<16x32xf32>
    %272 = vector.broadcast %260 : f32 to vector<16x32xf32>
    %273 = arith.addf %271, %272 : vector<16x32xf32>
    %cst_91 = arith.constant -1.650000e+01 : f32
    %274 = vector.broadcast %cst_91 : f32 to vector<16x32xf32>
    %275 = arith.maximumf %273, %274 : vector<16x32xf32>
    %cst_92 = arith.constant 4.100000e+00 : f32
    %276 = vector.broadcast %cst_92 : f32 to vector<16x32xf32>
    %277 = arith.minimumf %275, %276 : vector<16x32xf32>
    %cst_93 = arith.constant -1.650000e+01 : f32
    %278 = arith.maximumf %260, %cst_93 : f32
    %cst_94 = arith.constant 4.100000e+00 : f32
    %279 = arith.minimumf %278, %cst_94 : f32
    %cst_95 = arith.constant dense<0xFF800000> : vector<32xf32>
    %280 = vector.multi_reduction <maximumf>, %277, %cst_95 [0] : vector<16x32xf32> to vector<32xf32>
    %281 = vector.shape_cast %280 : vector<32xf32> to vector<1x32xf32>
    %282 = vector.broadcast %279 : f32 to vector<1x32xf32>
    %283 = arith.maximumf %281, %282 : vector<1x32xf32>
    %284 = vector.broadcast %283 : vector<1x32xf32> to vector<16x32xf32>
    %285 = arith.subf %277, %284 : vector<16x32xf32>
    %286 = math.exp %285 : vector<16x32xf32>
    %287 = vector.broadcast %279 : f32 to vector<1x32xf32>
    %288 = arith.subf %287, %283 : vector<1x32xf32>
    %289 = math.exp %288 : vector<1x32xf32>
    %cst_96 = arith.constant dense<0.000000e+00> : vector<32xf32>
    %290 = vector.multi_reduction <add>, %286, %cst_96 [0] : vector<16x32xf32> to vector<32xf32>
    %291 = vector.shape_cast %290 : vector<32xf32> to vector<1x32xf32>
    %cst_97 = arith.constant 2.000000e+00 : f32
    %292 = vector.broadcast %cst_97 : f32 to vector<1x32xf32>
    %293 = arith.mulf %292, %289 : vector<1x32xf32>
    %294 = arith.addf %291, %293 : vector<1x32xf32>
    %295 = tpu.reciprocal %294 : vector<1x32xf32> -> vector<1x32xf32>
    %296 = vector.broadcast %295 : vector<1x32xf32> to vector<16x32xf32>
    %297 = arith.mulf %286, %296 : vector<16x32xf32>
    %298 = arith.mulf %289, %295 : vector<1x32xf32>
    %c1_98 = arith.constant 1 : index
    %c218 = arith.constant 218 : index
    %299 = vector.load %arg3[%c1_98, %c218] : memref<18x288xf32, #tpu.memory_space<vmem>>, vector<16x32xf32>
    tpu.vector_store %arg3[%c1_98, %c218], %297 {strides = array<i32>} : memref<18x288xf32, #tpu.memory_space<vmem>>, vector<16x32xf32>,
    %c0_99 = arith.constant 0 : index
    %c218_100 = arith.constant 218 : index
    %300 = vector.load %arg3[%c0_99, %c218_100] : memref<18x288xf32, #tpu.memory_space<vmem>>, vector<1x32xf32>
    tpu.vector_store %arg3[%c0_99, %c218_100], %298 {strides = array<i32>} : memref<18x288xf32, #tpu.memory_space<vmem>>, vector<1x32xf32>,
    %c17_101 = arith.constant 17 : index
    %c218_102 = arith.constant 218 : index
    %301 = vector.load %arg3[%c17_101, %c218_102] : memref<18x288xf32, #tpu.memory_space<vmem>>, vector<1x32xf32>
    tpu.vector_store %arg3[%c17_101, %c218_102], %298 {strides = array<i32>} : memref<18x288xf32, #tpu.memory_space<vmem>>, vector<1x32xf32>,
    %c7_103 = arith.constant 7 : index
    %302 = memref.load %arg1[%c7_103] : memref<8xf32, #tpu.memory_space<smem>>
    %c21 = arith.constant 21 : index
    %303 = memref.load %arg0[%c21] : memref<24xf32, #tpu.memory_space<smem>>
    %304 = vector.broadcast %303 : f32 to vector<16x32xf32>
    %305 = arith.mulf %3, %304 : vector<16x32xf32>
    %c22 = arith.constant 22 : index
    %306 = memref.load %arg0[%c22] : memref<24xf32, #tpu.memory_space<smem>>
    %307 = vector.broadcast %306 : f32 to vector<16x32xf32>
    %308 = arith.mulf %5, %307 : vector<16x32xf32>
    %309 = arith.addf %305, %308 : vector<16x32xf32>
    %c23 = arith.constant 23 : index
    %310 = memref.load %arg0[%c23] : memref<24xf32, #tpu.memory_space<smem>>
    %311 = vector.broadcast %310 : f32 to vector<16x32xf32>
    %312 = arith.mulf %7, %311 : vector<16x32xf32>
    %313 = arith.addf %309, %312 : vector<16x32xf32>
    %314 = vector.broadcast %302 : f32 to vector<16x32xf32>
    %315 = arith.addf %313, %314 : vector<16x32xf32>
    %cst_104 = arith.constant -1.650000e+01 : f32
    %316 = vector.broadcast %cst_104 : f32 to vector<16x32xf32>
    %317 = arith.maximumf %315, %316 : vector<16x32xf32>
    %cst_105 = arith.constant 4.100000e+00 : f32
    %318 = vector.broadcast %cst_105 : f32 to vector<16x32xf32>
    %319 = arith.minimumf %317, %318 : vector<16x32xf32>
    %cst_106 = arith.constant -1.650000e+01 : f32
    %320 = arith.maximumf %302, %cst_106 : f32
    %cst_107 = arith.constant 4.100000e+00 : f32
    %321 = arith.minimumf %320, %cst_107 : f32
    %cst_108 = arith.constant dense<0xFF800000> : vector<32xf32>
    %322 = vector.multi_reduction <maximumf>, %319, %cst_108 [0] : vector<16x32xf32> to vector<32xf32>
    %323 = vector.shape_cast %322 : vector<32xf32> to vector<1x32xf32>
    %324 = vector.broadcast %321 : f32 to vector<1x32xf32>
    %325 = arith.maximumf %323, %324 : vector<1x32xf32>
    %326 = vector.broadcast %325 : vector<1x32xf32> to vector<16x32xf32>
    %327 = arith.subf %319, %326 : vector<16x32xf32>
    %328 = math.exp %327 : vector<16x32xf32>
    %329 = vector.broadcast %321 : f32 to vector<1x32xf32>
    %330 = arith.subf %329, %325 : vector<1x32xf32>
    %331 = math.exp %330 : vector<1x32xf32>
    %cst_109 = arith.constant dense<0.000000e+00> : vector<32xf32>
    %332 = vector.multi_reduction <add>, %328, %cst_109 [0] : vector<16x32xf32> to vector<32xf32>
    %333 = vector.shape_cast %332 : vector<32xf32> to vector<1x32xf32>
    %cst_110 = arith.constant 2.000000e+00 : f32
    %334 = vector.broadcast %cst_110 : f32 to vector<1x32xf32>
    %335 = arith.mulf %334, %331 : vector<1x32xf32>
    %336 = arith.addf %333, %335 : vector<1x32xf32>
    %337 = tpu.reciprocal %336 : vector<1x32xf32> -> vector<1x32xf32>
    %338 = vector.broadcast %337 : vector<1x32xf32> to vector<16x32xf32>
    %339 = arith.mulf %328, %338 : vector<16x32xf32>
    %340 = arith.mulf %331, %337 : vector<1x32xf32>
    %c1_111 = arith.constant 1 : index
    %c254 = arith.constant 254 : index
    %341 = vector.load %arg3[%c1_111, %c254] : memref<18x288xf32, #tpu.memory_space<vmem>>, vector<16x32xf32>
    tpu.vector_store %arg3[%c1_111, %c254], %339 {strides = array<i32>} : memref<18x288xf32, #tpu.memory_space<vmem>>, vector<16x32xf32>,
    %c0_112 = arith.constant 0 : index
    %c254_113 = arith.constant 254 : index
    %342 = vector.load %arg3[%c0_112, %c254_113] : memref<18x288xf32, #tpu.memory_space<vmem>>, vector<1x32xf32>
    tpu.vector_store %arg3[%c0_112, %c254_113], %340 {strides = array<i32>} : memref<18x288xf32, #tpu.memory_space<vmem>>, vector<1x32xf32>,
    %c17_114 = arith.constant 17 : index
    %c254_115 = arith.constant 254 : index
    %343 = vector.load %arg3[%c17_114, %c254_115] : memref<18x288xf32, #tpu.memory_space<vmem>>, vector<1x32xf32>
    tpu.vector_store %arg3[%c17_114, %c254_115], %340 {strides = array<i32>} : memref<18x288xf32, #tpu.memory_space<vmem>>, vector<1x32xf32>,
    return
  }
}

</mosaic_0001>

<llo_original>
// kernel: model_forward.1
$region0: #{model_forward.1}
  #allocation0 [shape = 'u32[]', space=smem, size = 0x4, offset = 0x4, fixed_abs, tag = 'smem constant byte address 0x4 - core index']
  #allocation1 [shape = 'u32[144,128]{1,0:T(1,128)}', space=vmem, size = 0x12000, scoped, tag = 'internal scratch']
  %s0 = inlined_call_operand.vmem [shape: f32[24], index: 0, kind: input, shape index: {}]
  %s1 = inlined_call_operand.vmem [shape: f32[8], index: 1, kind: input, shape index: {}]
  %s2 = inlined_call_operand.vmem [shape: f32[3,16,32], index: 2, kind: input, shape index: {}]
  %s3 = inlined_call_operand.vmem [shape: f32[18,288], index: 3, kind: output, shape index: {}]
  %s4 = sld [smem:[#allocation0]]
  $region30: #{model_forward.1} parent=0
    _
  %s6 = ssub.s32 1, %s4
  %s7 = scalar_select 0, %s6, %s4
  $region1: #{model_forward.1} parent=0
    #allocation2 [shape = 'u8[512]{0}', space=smem, size = 0x200, scoped, tag = 'input window, operand 0, single buffered']
    #allocation3 [shape = 's32[1]{0}', space=sflag, size = 0x4, scoped, tag = 'scoped memory for model_forward.1']
    #allocation4 [shape = 'u8[512]{0}', space=smem, size = 0x200, scoped, tag = 'input window, operand 1, single buffered']
    #allocation5 [shape = 's32[1]{0}', space=sflag, size = 0x4, scoped, tag = 'scoped memory for model_forward.1']
    %8 = vsyncpa [#allocation3], 0
    %9 = vsyncpa [#allocation5], 0
    // Predicated region
    $region2: #{model_forward.1} parent=1 // pred_check
      _
    $region3: #{model_forward.1} parent=1 // pred_check_branch
      %11 = sbr.rel (0) target = $region5
    $region4: #{model_forward.1} parent=1 // pred_region
      %s13 = ssub.s32 16, 16
      %14 = vsyncadd [#allocation3], %s13
      %s16 = sshll.u32 %s0, 4
      %s17 = int_to_ptr.vmem [resolvable:$true] %s16
      %19 = dma.vmem_to_smem %s17, 16, [#allocation2], [#allocation3]
    $region5: #{model_forward.1} parent=1 // pred_fallthru
      _
    // Predicated region
    $region6: #{model_forward.1} parent=1 // pred_check
      _
    $region7: #{model_forward.1} parent=1 // pred_check_branch
      %21 = sbr.rel (0) target = $region9
    $region8: #{model_forward.1} parent=1 // pred_region
      %s23 = ssub.s32 16, 16
      %24 = vsyncadd [#allocation5], %s23
      %s26 = sshll.u32 %s1, 4
      %s27 = int_to_ptr.vmem [resolvable:$true] %s26
      %29 = dma.vmem_to_smem %s27, 16, [#allocation4], [#allocation5]
    $region9: #{model_forward.1} parent=1 // pred_fallthru
      _
    // Predicated region
    $region10: #{model_forward.1} parent=1 // pred_check
      _
    $region11: #{model_forward.1} parent=1 // pred_check_branch
      %31 = sbr.rel (0) target = $region13
    $region12: #{model_forward.1} parent=1 // pred_region
      _
    $region13: #{model_forward.1} parent=1 // pred_fallthru
      _
    // Predicated region
    $region14: #{model_forward.1} parent=1 // pred_check
      _
    $region15: #{model_forward.1} parent=1 // pred_check_branch
      %33 = sbr.rel (0) target = $region17
    $region16: #{model_forward.1} parent=1 // pred_region
      %34 = dma.done [#allocation3], 16
    $region17: #{model_forward.1} parent=1 // pred_fallthru
      _
    // Predicated region
    $region18: #{model_forward.1} parent=1 // pred_check
      _
    $region19: #{model_forward.1} parent=1 // pred_check_branch
      %36 = sbr.rel (0) target = $region21
    $region20: #{model_forward.1} parent=1 // pred_region
      %37 = dma.done [#allocation5], 16
    $region21: #{model_forward.1} parent=1 // pred_fallthru
      _
    %38 = sfence
    %39 = vst [vmem:[%s3] sm:$0xff] 0.055555556
    %40 = vst [vmem:[%s3 + $0x8] sm:$0xff] 0.055555556
    %vm41 = vcmask 261120
    %42 = vst.msk [vmem:[%s3 + $0x10] sm:$0xff] %vm41, 0.055555556
    %43 = vst [vmem:[%s3 + $0x18] sm:$0xff] 0.055555556
    %44 = vst [vmem:[%s3 + $0x20] sm:$0xff] 0.055555556
    %45 = vst.msk [vmem:[%s3 + $0x28] sm:$0xff] %vm41, 0.055555556
    %46 = vst [vmem:[%s3 + $0x30] sm:$0x3] 0.055555556
    %47 = vst [vmem:[%s3 + $0x38] sm:$0x3] 0.055555556
    %vm48 = vcmask 254976
    %49 = vst.msk [vmem:[%s3 + $0x40] sm:$0x3] %vm48, 0.055555556
    %v50 = vld [vmem:[%s2] sm:$0xff]
    %v51 = vld [vmem:[%s2 + $0x8] sm:$0xff]
    %s52 = scalar_lea.vmem %s2, 16
    %v53 = vld [vmem:[%s52] sm:$0xff]
    %v54 = vld [vmem:[%s52 + $0x8] sm:$0xff]
    %s55 = scalar_lea.vmem %s2, 32
    %v56 = vld [vmem:[%s55] sm:$0xff]
    %v57 = vld [vmem:[%s55 + $0x8] sm:$0xff]
    %s58 = sld [smem:[#allocation4]]
    %s59 = sld [smem:[#allocation2]]
    %v60 = vstv %s59
    %v61 = vmul.f32 %v50, %v60
    %v62 = vmul.f32 %v51, %v60
    %s63 = sld [smem:[#allocation2 + $0x1]]
    %v64 = vstv %s63
    %v65 = vmul.f32 %v53, %v64
    %v66 = vmul.f32 %v54, %v64
    %v67 = vadd.f32 %v61, %v65
    %v68 = vadd.f32 %v62, %v66
    %s69 = sld [smem:[#allocation2 + $0x2]]
    %v70 = vstv %s69
    %v71 = vmul.f32 %v56, %v70
    %v72 = vmul.f32 %v57, %v70
    %v73 = vadd.f32 %v67, %v71
    %v74 = vadd.f32 %v68, %v72
    %v75 = vstv %s58
    %v76 = vadd.f32 %v73, %v75
    %v77 = vadd.f32 %v74, %v75
    %v78 = vmax.f32 %v76, -16.5
    %v79 = vmax.f32 %v77, -16.5
    %v80 = vmin.f32 %v78, 4.1
    %v81 = vmin.f32 %v79, 4.1
    %s82 = smax.f32 %s58, -16.5
    %s83 = smin.f32 %s82, 4.1
    %v84 = vsel %vm41, %v80, -inf
    %v85 = vsel %vm41, %v81, -inf
    %v86 = vmax.f32 %v84, %v85
    %v87 = vrot.slane %v86, 4
    %v88 = vmax.f32 %v86, %v87
    %v89 = vrot.slane %v88, 2
    %v90 = vmax.f32 %v88, %v89
    %v91 = vrot.slane %v90, 1
    %v92 = vmax.f32 %v90, %v91
    %v93 = vstv %s83
    %v94 = vmax.f32 %v92, %v93
    %v95 = vsub.f32 %v80, %v94
    %v96 = vsub.f32 %v81, %v94
    %v97 = vmul.f32 %v95, 1.442695
    %v98 = vpow.pop %v97
    %v99 = vmul.f32 %v96, 1.442695
    %v100 = vpow.pop %v99
    %v101 = vsub.f32 %v93, %v94
    %v102 = vmul.f32 %v101, 1.442695
    %v103 = vpow.pop %v102
    %v104 = vsel %vm41, %v98, 0.0
    %v105 = vsel %vm41, %v100, 0.0
    %v106 = vadd.f32 %v104, %v105
    %v107 = vrot.slane %v106, 4
    %v108 = vadd.f32 %v106, %v107
    %v109 = vrot.slane %v108, 2
    %v110 = vadd.f32 %v108, %v109
    %v111 = vrot.slane %v110, 1
    %v112 = vadd.f32 %v110, %v111
    %v113 = vmul.f32 %v103, 2.0
    %v114 = vadd.f32 %v112, %v113
    %v115 = vrcp.pop %v114
    %v116 = vmul.f32 %v98, %v115
    %v117 = vmul.f32 %v100, %v115
    %v118 = vmul.f32 %v103, %v115
    %vm121 = vcmask 1040384
    %v122 = vrot.slane %v116, 7
    %v123 = vrot.slane %v117, 7
    %v124 = vsel %vm121, %v122, %v123
    %125 = vrot.lane.b32.xlu0 %v122, 2
    %v126 = vpop.permute.xlu0 %125
    %127 = vrot.lane.b32.xlu0 %v124, 2
    %v128 = vpop.permute.xlu0 %127
    %129 = vrot.lane.b32.xlu0 %v123, 2
    %v130 = vpop.permute.xlu0 %129
    %vm134 = vcmask 277521
    %135 = vst.msk [vmem:[%s3] sm:$0xfe] %vm134, %v126
    %vm136 = vcmask 277520
    %137 = vst.msk [vmem:[%s3 + $0x18] sm:$0xff] %vm136, %v128
    %vm138 = vcmask 270352
    %139 = vst.msk [vmem:[%s3 + $0x30] sm:$0x1] %vm138, %v130
    %141 = vrot.lane.b32.xlu0 %v118, 2
    %v142 = vpop.permute.xlu0 %141
    %144 = vst.msk [vmem:[%s3] sm:$0x1] %vm138, %v142
    %145 = vst.msk [vmem:[%s3 + $0x31] sm:$0x1] %vm138, %v142
    %s146 = sld [smem:[#allocation4 + $0x1]]
    %s147 = sld [smem:[#allocation2 + $0x3]]
    %v148 = vstv %s147
    %v149 = vmul.f32 %v50, %v148
    %v150 = vmul.f32 %v51, %v148
    %s151 = sld [smem:[#allocation2 + $0x4]]
    %v152 = vstv %s151
    %v153 = vmul.f32 %v53, %v152
    %v154 = vmul.f32 %v54, %v152
    %v155 = vadd.f32 %v149, %v153
    %v156 = vadd.f32 %v150, %v154
    %s157 = sld [smem:[#allocation2 + $0x5]]
    %v158 = vstv %s157
    %v159 = vmul.f32 %v56, %v158
    %v160 = vmul.f32 %v57, %v158
    %v161 = vadd.f32 %v155, %v159
    %v162 = vadd.f32 %v156, %v160
    %v163 = vstv %s146
    %v164 = vadd.f32 %v161, %v163
    %v165 = vadd.f32 %v162, %v163
    %v166 = vmax.f32 %v164, -16.5
    %v167 = vmax.f32 %v165, -16.5
    %v168 = vmin.f32 %v166, 4.1
    %v169 = vmin.f32 %v167, 4.1
    %s170 = smax.f32 %s146, -16.5
    %s171 = smin.f32 %s170, 4.1
    %v172 = vsel %vm41, %v168, -inf
    %v173 = vsel %vm41, %v169, -inf
    %v174 = vmax.f32 %v172, %v173
    %v175 = vrot.slane %v174, 4
    %v176 = vmax.f32 %v174, %v175
    %v177 = vrot.slane %v176, 2
    %v178 = vmax.f32 %v176, %v177
    %v179 = vrot.slane %v178, 1
    %v180 = vmax.f32 %v178, %v179
    %v181 = vstv %s171
    %v182 = vmax.f32 %v180, %v181
    %v183 = vsub.f32 %v168, %v182
    %v184 = vsub.f32 %v169, %v182
    %v185 = vmul.f32 %v183, 1.442695
    %v186 = vpow.pop %v185
    %v187 = vmul.f32 %v184, 1.442695
    %v188 = vpow.pop %v187
    %v189 = vsub.f32 %v181, %v182
    %v190 = vmul.f32 %v189, 1.442695
    %v191 = vpow.pop %v190
    %v192 = vsel %vm41, %v186, 0.0
    %v193 = vsel %vm41, %v188, 0.0
    %v194 = vadd.f32 %v192, %v193
    %v195 = vrot.slane %v194, 4
    %v196 = vadd.f32 %v194, %v195
    %v197 = vrot.slane %v196, 2
    %v198 = vadd.f32 %v196, %v197
    %v199 = vrot.slane %v198, 1
    %v200 = vadd.f32 %v198, %v199
    %v201 = vmul.f32 %v191, 2.0
    %v202 = vadd.f32 %v200, %v201
    %v203 = vrcp.pop %v202
    %v204 = vmul.f32 %v186, %v203
    %v205 = vmul.f32 %v188, %v203
    %v206 = vmul.f32 %v191, %v203
    %v209 = vrot.slane %v204, 7
    %v210 = vrot.slane %v205, 7
    %v211 = vsel %vm121, %v209, %v210
    %212 = vrot.lane.b32.xlu0 %v209, 38
    %v213 = vpop.permute.xlu0 %212
    %214 = vrot.lane.b32.xlu0 %v211, 38
    %v215 = vpop.permute.xlu0 %214
    %216 = vrot.lane.b32.xlu0 %v210, 38
    %v217 = vpop.permute.xlu0 %216
    %vm221 = vcmask 572721
    %222 = vst.msk [vmem:[%s3] sm:$0xfe] %vm221, %v213
    %vm223 = vcmask 572720
    %224 = vst.msk [vmem:[%s3 + $0x18] sm:$0xff] %vm223, %v215
    %vm225 = vcmask 565552
    %226 = vst.msk [vmem:[%s3 + $0x30] sm:$0x1] %vm225, %v217
    %228 = vrot.lane.b32.xlu0 %v206, 38
    %v229 = vpop.permute.xlu0 %228
    %231 = vst.msk [vmem:[%s3] sm:$0x1] %vm225, %v229
    %232 = vst.msk [vmem:[%s3 + $0x31] sm:$0x1] %vm225, %v229
    %s233 = sld [smem:[#allocation4 + $0x2]]
    %s234 = sld [smem:[#allocation2 + $0x6]]
    %v235 = vstv %s234
    %v236 = vmul.f32 %v50, %v235
    %v237 = vmul.f32 %v51, %v235
    %s238 = sld [smem:[#allocation2 + $0x7]]
    %v239 = vstv %s238
    %v240 = vmul.f32 %v53, %v239
    %v241 = vmul.f32 %v54, %v239
    %v242 = vadd.f32 %v236, %v240
    %v243 = vadd.f32 %v237, %v241
    %s244 = sld [smem:[#allocation2 + $0x8]]
    %v245 = vstv %s244
    %v246 = vmul.f32 %v56, %v245
    %v247 = vmul.f32 %v57, %v245
    %v248 = vadd.f32 %v242, %v246
    %v249 = vadd.f32 %v243, %v247
    %v250 = vstv %s233
    %v251 = vadd.f32 %v248, %v250
    %v252 = vadd.f32 %v249, %v250
    %v253 = vmax.f32 %v251, -16.5
    %v254 = vmax.f32 %v252, -16.5
    %v255 = vmin.f32 %v253, 4.1
    %v256 = vmin.f32 %v254, 4.1
    %s257 = smax.f32 %s233, -16.5
    %s258 = smin.f32 %s257, 4.1
    %v259 = vsel %vm41, %v255, -inf
    %v260 = vsel %vm41, %v256, -inf
    %v261 = vmax.f32 %v259, %v260
    %v262 = vrot.slane %v261, 4
    %v263 = vmax.f32 %v261, %v262
    %v264 = vrot.slane %v263, 2
    %v265 = vmax.f32 %v263, %v264
    %v266 = vrot.slane %v265, 1
    %v267 = vmax.f32 %v265, %v266
    %v268 = vstv %s258
    %v269 = vmax.f32 %v267, %v268
    %v270 = vsub.f32 %v255, %v269
    %v271 = vsub.f32 %v256, %v269
    %v272 = vmul.f32 %v270, 1.442695
    %v273 = vpow.pop %v272
    %v274 = vmul.f32 %v271, 1.442695
    %v275 = vpow.pop %v274
    %v276 = vsub.f32 %v268, %v269
    %v277 = vmul.f32 %v276, 1.442695
    %v278 = vpow.pop %v277
    %v279 = vsel %vm41, %v273, 0.0
    %v280 = vsel %vm41, %v275, 0.0
    %v281 = vadd.f32 %v279, %v280
    %v282 = vrot.slane %v281, 4
    %v283 = vadd.f32 %v281, %v282
    %v284 = vrot.slane %v283, 2
    %v285 = vadd.f32 %v283, %v284
    %v286 = vrot.slane %v285, 1
    %v287 = vadd.f32 %v285, %v286
    %v288 = vmul.f32 %v278, 2.0
    %v289 = vadd.f32 %v287, %v288
    %v290 = vrcp.pop %v289
    %v291 = vmul.f32 %v273, %v290
    %v292 = vmul.f32 %v275, %v290
    %v293 = vmul.f32 %v278, %v290
    %v296 = vrot.slane %v291, 7
    %v297 = vrot.slane %v292, 7
    %v298 = vsel %vm121, %v296, %v297
    %299 = vrot.lane.b32.xlu0 %v296, 74
    %v300 = vpop.permute.xlu0 %299
    %301 = vrot.lane.b32.xlu0 %v298, 74
    %v302 = vpop.permute.xlu0 %301
    %303 = vrot.lane.b32.xlu0 %v297, 74
    %v304 = vpop.permute.xlu0 %303
    %vm308 = vcmask 867921
    %309 = vst.msk [vmem:[%s3] sm:$0xfe] %vm308, %v300
    %vm310 = vcmask 867920
    %311 = vst.msk [vmem:[%s3 + $0x18] sm:$0xff] %vm310, %v302
    %vm312 = vcmask 860752
    %313 = vst.msk [vmem:[%s3 + $0x30] sm:$0x1] %vm312, %v304
    %315 = vrot.lane.b32.xlu0 %v293, 74
    %v316 = vpop.permute.xlu0 %315
    %318 = vst.msk [vmem:[%s3] sm:$0x1] %vm312, %v316
    %319 = vst.msk [vmem:[%s3 + $0x31] sm:$0x1] %vm312, %v316
    %s320 = sld [smem:[#allocation4 + $0x3]]
    %s321 = sld [smem:[#allocation2 + $0x9]]
    %v322 = vstv %s321
    %v323 = vmul.f32 %v50, %v322
    %v324 = vmul.f32 %v51, %v322
    %s325 = sld [smem:[#allocation2 + $0xa]]
    %v326 = vstv %s325
    %v327 = vmul.f32 %v53, %v326
    %v328 = vmul.f32 %v54, %v326
    %v329 = vadd.f32 %v323, %v327
    %v330 = vadd.f32 %v324, %v328
    %s331 = sld [smem:[#allocation2 + $0xb]]
    %v332 = vstv %s331
    %v333 = vmul.f32 %v56, %v332
    %v334 = vmul.f32 %v57, %v332
    %v335 = vadd.f32 %v329, %v333
    %v336 = vadd.f32 %v330, %v334
    %v337 = vstv %s320
    %v338 = vadd.f32 %v335, %v337
    %v339 = vadd.f32 %v336, %v337
    %v340 = vmax.f32 %v338, -16.5
    %v341 = vmax.f32 %v339, -16.5
    %v342 = vmin.f32 %v340, 4.1
    %v343 = vmin.f32 %v341, 4.1
    %s344 = smax.f32 %s320, -16.5
    %s345 = smin.f32 %s344, 4.1
    %v346 = vsel %vm41, %v342, -inf
    %v347 = vsel %vm41, %v343, -inf
    %v348 = vmax.f32 %v346, %v347
    %v349 = vrot.slane %v348, 4
    %v350 = vmax.f32 %v348, %v349
    %v351 = vrot.slane %v350, 2
    %v352 = vmax.f32 %v350, %v351
    %v353 = vrot.slane %v352, 1
    %v354 = vmax.f32 %v352, %v353
    %v355 = vstv %s345
    %v356 = vmax.f32 %v354, %v355
    %v357 = vsub.f32 %v342, %v356
    %v358 = vsub.f32 %v343, %v356
    %v359 = vmul.f32 %v357, 1.442695
    %v360 = vpow.pop %v359
    %v361 = vmul.f32 %v358, 1.442695
    %v362 = vpow.pop %v361
    %v363 = vsub.f32 %v355, %v356
    %v364 = vmul.f32 %v363, 1.442695
    %v365 = vpow.pop %v364
    %v366 = vsel %vm41, %v360, 0.0
    %v367 = vsel %vm41, %v362, 0.0
    %v368 = vadd.f32 %v366, %v367
    %v369 = vrot.slane %v368, 4
    %v370 = vadd.f32 %v368, %v369
    %v371 = vrot.slane %v370, 2
    %v372 = vadd.f32 %v370, %v371
    %v373 = vrot.slane %v372, 1
    %v374 = vadd.f32 %v372, %v373
    %v375 = vmul.f32 %v365, 2.0
    %v376 = vadd.f32 %v374, %v375
    %v377 = vrcp.pop %v376
    %v378 = vmul.f32 %v360, %v377
    %v379 = vmul.f32 %v362, %v377
    %v380 = vmul.f32 %v365, %v377
    %v383 = vrot.slane %v378, 7
    %v384 = vrot.slane %v379, 7
    %v385 = vsel %vm121, %v383, %v384
    %386 = vrot.lane.b32.xlu0 %v383, 110
    %v387 = vpop.permute.xlu0 %386
    %388 = vrot.lane.b32.xlu0 %v385, 110
    %v389 = vpop.permute.xlu0 %388
    %390 = vrot.lane.b32.xlu0 %v384, 110
    %v391 = vpop.permute.xlu0 %390
    %vm395 = vcmask 1048433
    %396 = vst.msk [vmem:[%s3] sm:$0xfe] %vm395, %v387
    %vm397 = vcmask 113665
    %398 = vst.msk [vmem:[%s3 + $0x8] sm:$0xfe] %vm397, %v387
    %vm399 = vcmask 1048432
    %400 = vst.msk [vmem:[%s3 + $0x18] sm:$0xff] %vm399, %v389
    %vm401 = vcmask 113664
    %402 = vst.msk [vmem:[%s3 + $0x20] sm:$0xff] %vm401, %v389
    %vm403 = vcmask 1041264
    %404 = vst.msk [vmem:[%s3 + $0x30] sm:$0x1] %vm403, %v391
    %vm405 = vcmask 106496
    %406 = vst.msk [vmem:[%s3 + $0x38] sm:$0x1] %vm405, %v391
    %408 = vrot.lane.b32.xlu0 %v380, 110
    %v409 = vpop.permute.xlu0 %408
    %411 = vst.msk [vmem:[%s3] sm:$0x1] %vm403, %v409
    %412 = vst.msk [vmem:[%s3 + $0x8] sm:$0x1] %vm405, %v409
    %413 = vst.msk [vmem:[%s3 + $0x31] sm:$0x1] %vm403, %v409
    %414 = vst.msk [vmem:[%s3 + $0x39] sm:$0x1] %vm405, %v409
    %s415 = sld [smem:[#allocation4 + $0x4]]
    %s416 = sld [smem:[#allocation2 + $0xc]]
    %v417 = vstv %s416
    %v418 = vmul.f32 %v50, %v417
    %v419 = vmul.f32 %v51, %v417
    %s420 = sld [smem:[#allocation2 + $0xd]]
    %v421 = vstv %s420
    %v422 = vmul.f32 %v53, %v421
    %v423 = vmul.f32 %v54, %v421
    %v424 = vadd.f32 %v418, %v422
    %v425 = vadd.f32 %v419, %v423
    %s426 = sld [smem:[#allocation2 + $0xe]]
    %v427 = vstv %s426
    %v428 = vmul.f32 %v56, %v427
    %v429 = vmul.f32 %v57, %v427
    %v430 = vadd.f32 %v424, %v428
    %v431 = vadd.f32 %v425, %v429
    %v432 = vstv %s415
    %v433 = vadd.f32 %v430, %v432
    %v434 = vadd.f32 %v431, %v432
    %v435 = vmax.f32 %v433, -16.5
    %v436 = vmax.f32 %v434, -16.5
    %v437 = vmin.f32 %v435, 4.1
    %v438 = vmin.f32 %v436, 4.1
    %s439 = smax.f32 %s415, -16.5
    %s440 = smin.f32 %s439, 4.1
    %v441 = vsel %vm41, %v437, -inf
    %v442 = vsel %vm41, %v438, -inf
    %v443 = vmax.f32 %v441, %v442
    %v444 = vrot.slane %v443, 4
    %v445 = vmax.f32 %v443, %v444
    %v446 = vrot.slane %v445, 2
    %v447 = vmax.f32 %v445, %v446
    %v448 = vrot.slane %v447, 1
    %v449 = vmax.f32 %v447, %v448
    %v450 = vstv %s440
    %v451 = vmax.f32 %v449, %v450
    %v452 = vsub.f32 %v437, %v451
    %v453 = vsub.f32 %v438, %v451
    %v454 = vmul.f32 %v452, 1.442695
    %v455 = vpow.pop %v454
    %v456 = vmul.f32 %v453, 1.442695
    %v457 = vpow.pop %v456
    %v458 = vsub.f32 %v450, %v451
    %v459 = vmul.f32 %v458, 1.442695
    %v460 = vpow.pop %v459
    %v461 = vsel %vm41, %v455, 0.0
    %v462 = vsel %vm41, %v457, 0.0
    %v463 = vadd.f32 %v461, %v462
    %v464 = vrot.slane %v463, 4
    %v465 = vadd.f32 %v463, %v464
    %v466 = vrot.slane %v465, 2
    %v467 = vadd.f32 %v465, %v466
    %v468 = vrot.slane %v467, 1
    %v469 = vadd.f32 %v467, %v468
    %v470 = vmul.f32 %v460, 2.0
    %v471 = vadd.f32 %v469, %v470
    %v472 = vrcp.pop %v471
    %v473 = vmul.f32 %v455, %v472
    %v474 = vmul.f32 %v457, %v472
    %v475 = vmul.f32 %v460, %v472
    %v478 = vrot.slane %v473, 7
    %v479 = vrot.slane %v474, 7
    %v480 = vsel %vm121, %v478, %v479
    %481 = vrot.lane.b32.xlu0 %v478, 18
    %v482 = vpop.permute.xlu0 %481
    %483 = vrot.lane.b32.xlu0 %v480, 18
    %v484 = vpop.permute.xlu0 %483
    %485 = vrot.lane.b32.xlu0 %v479, 18
    %v486 = vpop.permute.xlu0 %485
    %vm490 = vcmask 408721
    %491 = vst.msk [vmem:[%s3 + $0x8] sm:$0xfe] %vm490, %v482
    %vm492 = vcmask 408720
    %493 = vst.msk [vmem:[%s3 + $0x20] sm:$0xff] %vm492, %v484
    %vm494 = vcmask 401552
    %495 = vst.msk [vmem:[%s3 + $0x38] sm:$0x1] %vm494, %v486
    %497 = vrot.lane.b32.xlu0 %v475, 18
    %v498 = vpop.permute.xlu0 %497
    %500 = vst.msk [vmem:[%s3 + $0x8] sm:$0x1] %vm494, %v498
    %501 = vst.msk [vmem:[%s3 + $0x39] sm:$0x1] %vm494, %v498
    %s502 = sld [smem:[#allocation4 + $0x5]]
    %s503 = sld [smem:[#allocation2 + $0xf]]
    %v504 = vstv %s503
    %v505 = vmul.f32 %v50, %v504
    %v506 = vmul.f32 %v51, %v504
    %s507 = sld [smem:[#allocation2 + $0x10]]
    %v508 = vstv %s507
    %v509 = vmul.f32 %v53, %v508
    %v510 = vmul.f32 %v54, %v508
    %v511 = vadd.f32 %v505, %v509
    %v512 = vadd.f32 %v506, %v510
    %s513 = sld [smem:[#allocation2 + $0x11]]
    %v514 = vstv %s513
    %v515 = vmul.f32 %v56, %v514
    %v516 = vmul.f32 %v57, %v514
    %v517 = vadd.f32 %v511, %v515
    %v518 = vadd.f32 %v512, %v516
    %v519 = vstv %s502
    %v520 = vadd.f32 %v517, %v519
    %v521 = vadd.f32 %v518, %v519
    %v522 = vmax.f32 %v520, -16.5
    %v523 = vmax.f32 %v521, -16.5
    %v524 = vmin.f32 %v522, 4.1
    %v525 = vmin.f32 %v523, 4.1
    %s526 = smax.f32 %s502, -16.5
    %s527 = smin.f32 %s526, 4.1
    %v528 = vsel %vm41, %v524, -inf
    %v529 = vsel %vm41, %v525, -inf
    %v530 = vmax.f32 %v528, %v529
    %v531 = vrot.slane %v530, 4
    %v532 = vmax.f32 %v530, %v531
    %v533 = vrot.slane %v532, 2
    %v534 = vmax.f32 %v532, %v533
    %v535 = vrot.slane %v534, 1
    %v536 = vmax.f32 %v534, %v535
    %v537 = vstv %s527
    %v538 = vmax.f32 %v536, %v537
    %v539 = vsub.f32 %v524, %v538
    %v540 = vsub.f32 %v525, %v538
    %v541 = vmul.f32 %v539, 1.442695
    %v542 = vpow.pop %v541
    %v543 = vmul.f32 %v540, 1.442695
    %v544 = vpow.pop %v543
    %v545 = vsub.f32 %v537, %v538
    %v546 = vmul.f32 %v545, 1.442695
    %v547 = vpow.pop %v546
    %v548 = vsel %vm41, %v542, 0.0
    %v549 = vsel %vm41, %v544, 0.0
    %v550 = vadd.f32 %v548, %v549
    %v551 = vrot.slane %v550, 4
    %v552 = vadd.f32 %v550, %v551
    %v553 = vrot.slane %v552, 2
    %v554 = vadd.f32 %v552, %v553
    %v555 = vrot.slane %v554, 1
    %v556 = vadd.f32 %v554, %v555
    %v557 = vmul.f32 %v547, 2.0
    %v558 = vadd.f32 %v556, %v557
    %v559 = vrcp.pop %v558
    %v560 = vmul.f32 %v542, %v559
    %v561 = vmul.f32 %v544, %v559
    %v562 = vmul.f32 %v547, %v559
    %v565 = vrot.slane %v560, 7
    %v566 = vrot.slane %v561, 7
    %v567 = vsel %vm121, %v565, %v566
    %568 = vrot.lane.b32.xlu0 %v565, 54
    %v569 = vpop.permute.xlu0 %568
    %570 = vrot.lane.b32.xlu0 %v567, 54
    %v571 = vpop.permute.xlu0 %570
    %572 = vrot.lane.b32.xlu0 %v566, 54
    %v573 = vpop.permute.xlu0 %572
    %vm577 = vcmask 703921
    %578 = vst.msk [vmem:[%s3 + $0x8] sm:$0xfe] %vm577, %v569
    %vm579 = vcmask 703920
    %580 = vst.msk [vmem:[%s3 + $0x20] sm:$0xff] %vm579, %v571
    %vm581 = vcmask 696752
    %582 = vst.msk [vmem:[%s3 + $0x38] sm:$0x1] %vm581, %v573
    %584 = vrot.lane.b32.xlu0 %v562, 54
    %v585 = vpop.permute.xlu0 %584
    %587 = vst.msk [vmem:[%s3 + $0x8] sm:$0x1] %vm581, %v585
    %588 = vst.msk [vmem:[%s3 + $0x39] sm:$0x1] %vm581, %v585
    %s589 = sld [smem:[#allocation4 + $0x6]]
    %s590 = sld [smem:[#allocation2 + $0x12]]
    %v591 = vstv %s590
    %v592 = vmul.f32 %v50, %v591
    %v593 = vmul.f32 %v51, %v591
    %s594 = sld [smem:[#allocation2 + $0x13]]
    %v595 = vstv %s594
    %v596 = vmul.f32 %v53, %v595
    %v597 = vmul.f32 %v54, %v595
    %v598 = vadd.f32 %v592, %v596
    %v599 = vadd.f32 %v593, %v597
    %s600 = sld [smem:[#allocation2 + $0x14]]
    %v601 = vstv %s600
    %v602 = vmul.f32 %v56, %v601
    %v603 = vmul.f32 %v57, %v601
    %v604 = vadd.f32 %v598, %v602
    %v605 = vadd.f32 %v599, %v603
    %v606 = vstv %s589
    %v607 = vadd.f32 %v604, %v606
    %v608 = vadd.f32 %v605, %v606
    %v609 = vmax.f32 %v607, -16.5
    %v610 = vmax.f32 %v608, -16.5
    %v611 = vmin.f32 %v609, 4.1
    %v612 = vmin.f32 %v610, 4.1
    %s613 = smax.f32 %s589, -16.5
    %s614 = smin.f32 %s613, 4.1
    %v615 = vsel %vm41, %v611, -inf
    %v616 = vsel %vm41, %v612, -inf
    %v617 = vmax.f32 %v615, %v616
    %v618 = vrot.slane %v617, 4
    %v619 = vmax.f32 %v617, %v618
    %v620 = vrot.slane %v619, 2
    %v621 = vmax.f32 %v619, %v620
    %v622 = vrot.slane %v621, 1
    %v623 = vmax.f32 %v621, %v622
    %v624 = vstv %s614
    %v625 = vmax.f32 %v623, %v624
    %v626 = vsub.f32 %v611, %v625
    %v627 = vsub.f32 %v612, %v625
    %v628 = vmul.f32 %v626, 1.442695
    %v629 = vpow.pop %v628
    %v630 = vmul.f32 %v627, 1.442695
    %v631 = vpow.pop %v630
    %v632 = vsub.f32 %v624, %v625
    %v633 = vmul.f32 %v632, 1.442695
    %v634 = vpow.pop %v633
    %v635 = vsel %vm41, %v629, 0.0
    %v636 = vsel %vm41, %v631, 0.0
    %v637 = vadd.f32 %v635, %v636
    %v638 = vrot.slane %v637, 4
    %v639 = vadd.f32 %v637, %v638
    %v640 = vrot.slane %v639, 2
    %v641 = vadd.f32 %v639, %v640
    %v642 = vrot.slane %v641, 1
    %v643 = vadd.f32 %v641, %v642
    %v644 = vmul.f32 %v634, 2.0
    %v645 = vadd.f32 %v643, %v644
    %v646 = vrcp.pop %v645
    %v647 = vmul.f32 %v629, %v646
    %v648 = vmul.f32 %v631, %v646
    %v649 = vmul.f32 %v634, %v646
    %v652 = vrot.slane %v647, 7
    %v653 = vrot.slane %v648, 7
    %v654 = vsel %vm121, %v652, %v653
    %655 = vrot.lane.b32.xlu0 %v652, 90
    %v656 = vpop.permute.xlu0 %655
    %657 = vrot.lane.b32.xlu0 %v654, 90
    %v658 = vpop.permute.xlu0 %657
    %659 = vrot.lane.b32.xlu0 %v653, 90
    %v660 = vpop.permute.xlu0 %659
    %vm664 = vcmask 999121
    %665 = vst.msk [vmem:[%s3 + $0x8] sm:$0xfe] %vm664, %v656
    %vm666 = vcmask 999120
    %667 = vst.msk [vmem:[%s3 + $0x20] sm:$0xff] %vm666, %v658
    %vm668 = vcmask 991952
    %669 = vst.msk [vmem:[%s3 + $0x38] sm:$0x1] %vm668, %v660
    %671 = vrot.lane.b32.xlu0 %v649, 90
    %v672 = vpop.permute.xlu0 %671
    %674 = vst.msk [vmem:[%s3 + $0x8] sm:$0x1] %vm668, %v672
    %675 = vst.msk [vmem:[%s3 + $0x39] sm:$0x1] %vm668, %v672
    %s676 = sld [smem:[#allocation4 + $0x7]]
    %s677 = sld [smem:[#allocation2 + $0x15]]
    %v678 = vstv %s677
    %v679 = vmul.f32 %v50, %v678
    %v680 = vmul.f32 %v51, %v678
    %s681 = sld [smem:[#allocation2 + $0x16]]
    %v682 = vstv %s681
    %v683 = vmul.f32 %v53, %v682
    %v684 = vmul.f32 %v54, %v682
    %v685 = vadd.f32 %v679, %v683
    %v686 = vadd.f32 %v680, %v684
    %s687 = sld [smem:[#allocation2 + $0x17]]
    %v688 = vstv %s687
    %v689 = vmul.f32 %v56, %v688
    %v690 = vmul.f32 %v57, %v688
    %v691 = vadd.f32 %v685, %v689
    %v692 = vadd.f32 %v686, %v690
    %v693 = vstv %s676
    %v694 = vadd.f32 %v691, %v693
    %v695 = vadd.f32 %v692, %v693
    %v696 = vmax.f32 %v694, -16.5
    %v697 = vmax.f32 %v695, -16.5
    %v698 = vmin.f32 %v696, 4.1
    %v699 = vmin.f32 %v697, 4.1
    %s700 = smax.f32 %s676, -16.5
    %s701 = smin.f32 %s700, 4.1
    %v702 = vsel %vm41, %v698, -inf
    %v703 = vsel %vm41, %v699, -inf
    %v704 = vmax.f32 %v702, %v703
    %v705 = vrot.slane %v704, 4
    %v706 = vmax.f32 %v704, %v705
    %v707 = vrot.slane %v706, 2
    %v708 = vmax.f32 %v706, %v707
    %v709 = vrot.slane %v708, 1
    %v710 = vmax.f32 %v708, %v709
    %v711 = vstv %s701
    %v712 = vmax.f32 %v710, %v711
    %v713 = vsub.f32 %v698, %v712
    %v714 = vsub.f32 %v699, %v712
    %v715 = vmul.f32 %v713, 1.442695
    %v716 = vpow.pop %v715
    %v717 = vmul.f32 %v714, 1.442695
    %v718 = vpow.pop %v717
    %v719 = vsub.f32 %v711, %v712
    %v720 = vmul.f32 %v719, 1.442695
    %v721 = vpow.pop %v720
    %v722 = vsel %vm41, %v716, 0.0
    %v723 = vsel %vm41, %v718, 0.0
    %v724 = vadd.f32 %v722, %v723
    %v725 = vrot.slane %v724, 4
    %v726 = vadd.f32 %v724, %v725
    %v727 = vrot.slane %v726, 2
    %v728 = vadd.f32 %v726, %v727
    %v729 = vrot.slane %v728, 1
    %v730 = vadd.f32 %v728, %v729
    %v731 = vmul.f32 %v721, 2.0
    %v732 = vadd.f32 %v730, %v731
    %v733 = vrcp.pop %v732
    %v734 = vmul.f32 %v716, %v733
    %v735 = vmul.f32 %v718, %v733
    %v736 = vmul.f32 %v721, %v733
    %v739 = vrot.slane %v734, 7
    %v740 = vrot.slane %v735, 7
    %v741 = vsel %vm121, %v739, %v740
    %742 = vrot.lane.b32.xlu0 %v739, 126
    %v743 = vpop.permute.xlu0 %742
    %744 = vrot.lane.b32.xlu0 %v741, 126
    %v745 = vpop.permute.xlu0 %744
    %746 = vrot.lane.b32.xlu0 %v740, 126
    %v747 = vpop.permute.xlu0 %746
    %vm751 = vcmask 1048561
    %752 = vst.msk [vmem:[%s3 + $0x8] sm:$0xfe] %vm751, %v743
    %vm753 = vcmask 244737
    %754 = vst.msk [vmem:[%s3 + $0x10] sm:$0xfe] %vm753, %v743
    %vm755 = vcmask 1048560
    %756 = vst.msk [vmem:[%s3 + $0x20] sm:$0xff] %vm755, %v745
    %vm757 = vcmask 244736
    %758 = vst.msk [vmem:[%s3 + $0x28] sm:$0xff] %vm757, %v745
    %vm759 = vcmask 1041392
    %760 = vst.msk [vmem:[%s3 + $0x38] sm:$0x1] %vm759, %v747
    %vm761 = vcmask 237568
    %762 = vst.msk [vmem:[%s3 + $0x40] sm:$0x1] %vm761, %v747
    %764 = vrot.lane.b32.xlu0 %v736, 126
    %v765 = vpop.permute.xlu0 %764
    %767 = vst.msk [vmem:[%s3 + $0x8] sm:$0x1] %vm759, %v765
    %768 = vst.msk [vmem:[%s3 + $0x10] sm:$0x1] %vm761, %v765
    %769 = vst.msk [vmem:[%s3 + $0x39] sm:$0x1] %vm759, %v765
    %770 = vst.msk [vmem:[%s3 + $0x41] sm:$0x1] %vm761, %v765
    // Predicated region
    $region22: #{model_forward.1} parent=1 // pred_check
      _
    $region23: #{model_forward.1} parent=1 // pred_check_branch
      %772 = sbr.rel (0) target = $region25
    $region24: #{model_forward.1} parent=1 // pred_region
      _
    $region25: #{model_forward.1} parent=1 // pred_fallthru
      _
    // Predicated region
    $region26: #{model_forward.1} parent=1 // pred_check
      _
    $region27: #{model_forward.1} parent=1 // pred_check_branch
      %774 = sbr.rel (0) target = $region29
    $region28: #{model_forward.1} parent=1 // pred_region
      _
    $region29: #{model_forward.1} parent=1 // pred_fallthru
      _
    %775 = vsyncpa [#allocation3], 1
    %776 = vsyncpa [#allocation5], 1

</llo_original>
